<compile_context>
chip_gen: v7x
topology: tpu7x:2x2x1
jax: 0.10.0
libtpu: 0.0.40
codegen_flags: <defaults>
</compile_context>

<pallas_src>
import math

import jax
import jax.numpy as jnp
from jax.experimental import pallas as pl
from jax.experimental.pallas import tpu as pltpu


LANES = 128


def _round_up(n, m):
    return ((n + m - 1) // m) * m


def _pick_batch_tile(batch):
    # Largest power-of-two tile (<= 512 rows) that evenly divides the batch.
    # 512 x 128 f32 blocks (x2 double-buffers) + resident (128,128) weights
    # stay far under the 32 MiB scoped-VMEM default on every chip generation.
    for tb in (512, 256, 128, 64, 32, 16, 8):
        if batch % tb == 0:
            return tb
    return batch  # tiny / odd batch: single full-array block


def cmlp_kernel(x_ref, z_ref,
                w1x_ref, w1z_ref, b1_ref, beta1_ref,
                w2_ref, b2_ref, beta2_ref,
                w3_ref, b3_ref, o_ref):
    # Layer 1: Linear with fused concat(x, z), then Swish.
    h = jnp.dot(x_ref[...], w1x_ref[...], preferred_element_type=jnp.float32)
    h = h + jnp.dot(z_ref[...], w1z_ref[...], preferred_element_type=jnp.float32)
    h = h + b1_ref[...]                      # (TB, H1p) + (1, H1p)
    h = h * jax.nn.sigmoid(beta1_ref[...] * h)
    # Layer 2: Linear + Swish.
    h = jnp.dot(h, w2_ref[...], preferred_element_type=jnp.float32) + b2_ref[...]
    h = h * jax.nn.sigmoid(beta2_ref[...] * h)
    # Output layer: Linear; lane-dense (128-wide) padded store.
    o = jnp.dot(h, w3_ref[...], preferred_element_type=jnp.float32) + b3_ref[...]
    o_ref[...] = o.astype(o_ref.dtype)


def pad_params(params, dx):
    """Zero-pad all feature axes to 128-lane multiples and split W1 by (x, z) rows.

    Returns ((w1x, w1z, b1, beta1, w2, b2, beta2, w3, b3), output_dim), all f32.
    Zero columns/rows are inert through Swish and the linears, so the logical
    output is unchanged.
    """
    w1, b1, beta1, w2, b2, beta2, w3, b3 = params
    h1, h2, out_dim = w1.shape[1], w2.shape[1], w3.shape[1]
    h1p = _round_up(h1, LANES)
    h2p = _round_up(h2, LANES)
    outp = _round_up(out_dim, LANES)

    def pad2(a, rows, cols):
        return jnp.pad(a, ((0, rows - a.shape[0]), (0, cols - a.shape[1])))

    w1x = pad2(w1[:dx], dx, h1p)
    w1z = pad2(w1[dx:], w1.shape[0] - dx, h1p)
    b1p = pad2(b1, 1, h1p)
    bt1 = pad2(beta1, 1, h1p)
    w2p = pad2(w2, h1p, h2p)
    b2p = pad2(b2, 1, h2p)
    bt2 = pad2(beta2, 1, h2p)
    w3p = pad2(w3, h2p, outp)
    b3p = pad2(b3, 1, outp)
    return (w1x, w1z, b1p, bt1, w2p, b2p, bt2, w3p, b3p), out_dim


def cmlp_forward(x, z, padded_params, out_dim):
    """x: (B, dx), z: (B, dz); padded_params from pad_params. Returns (B, out_dim)."""
    w1x, w1z, b1, beta1, w2, b2, beta2, w3, b3 = padded_params
    B, dx = x.shape
    dz = z.shape[1]
    h1p = w1x.shape[1]
    h2p = w2.shape[1]
    outp = w3.shape[1]

    tb = _pick_batch_tile(B)
    grid = (B // tb,)

    def batch_spec(cols):
        return pl.BlockSpec((tb, cols), lambda i: (i, 0))

    def resident(shape):
        # Constant index map -> the block stays resident in VMEM, DMA'd once.
        return pl.BlockSpec(shape, lambda i: (0, 0))

    in_specs = [
        batch_spec(dx), batch_spec(dz),
        resident(w1x.shape), resident(w1z.shape),
        resident(b1.shape), resident(beta1.shape),
        resident(w2.shape), resident(b2.shape), resident(beta2.shape),
        resident(w3.shape), resident(b3.shape),
    ]

    flops = 2 * B * ((dx + dz) * h1p + h1p * h2p + h2p * outp)
    transcendentals = B * (h1p + h2p)  # one sigmoid per hidden activation
    bytes_accessed = 4 * (x.size + z.size + B * outp
                          + sum(a.size for a in padded_params))

    out_padded = pl.pallas_call(
        cmlp_kernel,
        out_shape=jax.ShapeDtypeStruct((B, outp), jnp.float32),
        grid=grid,
        in_specs=in_specs,
        out_specs=batch_spec(outp),
        compiler_params=pltpu.CompilerParams(
            dimension_semantics=("parallel",)),
        cost_estimate=pl.CostEstimate(
            flops=flops,
            transcendentals=transcendentals,
            bytes_accessed=bytes_accessed),
    )(x, z, w1x, w1z, b1, beta1, w2, b2, beta2, w3, b3)

    return out_padded[:, :out_dim]


def init_cmlp_params(key, input_dim=4, output_dim=2, units=(32, 32)):
    """Deterministic init mirroring nn.Linear default (uniform +-1/sqrt(fan_in));
    Swish beta initialised to ones, as in the PyTorch module."""
    params = []
    in_dim = input_dim
    dims = list(units) + [output_dim]
    keys = jax.random.split(key, 2 * len(dims))
    for i, out_dim in enumerate(dims):
        bound = 1.0 / math.sqrt(in_dim)
        w = jax.random.uniform(keys[2 * i], (in_dim, out_dim),
                               minval=-bound, maxval=bound, dtype=jnp.float32)
        b = jax.random.uniform(keys[2 * i + 1], (1, out_dim),
                               minval=-bound, maxval=bound, dtype=jnp.float32)
        if i < len(units):
            beta = jnp.ones((1, out_dim), dtype=jnp.float32)
            params.extend([w, b, beta])
        else:
            params.extend([w, b])
        in_dim = out_dim
    return tuple(params)


def cmlp_reference(x, z, params):
    """Pure-JAX reference of the PyTorch forward, for a sanity check."""
    w1, b1, beta1, w2, b2, beta2, w3, b3 = params
    h = jnp.concatenate((x, z), axis=1)
    h = h @ w1 + b1
    h = h * jax.nn.sigmoid(beta1 * h)
    h = h @ w2 + b2
    h = h * jax.nn.sigmoid(beta2 * h)
    return h @ w3 + b3


if __name__ == "__main__":
    key = jax.random.PRNGKey(0)
    kx, kz, kp = jax.random.split(key, 3)

    B, dx, dz = 8, 2, 2          # input_dim = dx + dz = 4
    units = (32, 32)
    output_dim = 2

    x = jax.random.normal(kx, (B, dx), dtype=jnp.float32)
    z = jax.random.normal(kz, (B, dz), dtype=jnp.float32)
    params = init_cmlp_params(kp, input_dim=dx + dz,
                              output_dim=output_dim, units=units)

    # One-time layout prep (lane-padding + W1 row split); amortized across calls.
    padded_params, out_dim = pad_params(params, dx)

    out = cmlp_forward(x, z, padded_params, out_dim)
    out = jax.block_until_ready(out)

    ref = cmlp_reference(x, z, params)
    assert out.shape == (B, output_dim)
    assert jnp.allclose(out, ref, atol=1e-5, rtol=1e-5)

    print("KERNEL_OK")
</pallas_src>

<mosaic_0001>
module attributes {stable_mosaic.version = 11 : i64} {
  func.func @cmlp_kernel(%arg0: i32, %arg1: memref<8x2xf32, #tpu.memory_space<vmem>>, %arg2: memref<8x2xf32, #tpu.memory_space<vmem>>, %arg3: memref<2x128xf32, #tpu.memory_space<vmem>>, %arg4: memref<2x128xf32, #tpu.memory_space<vmem>>, %arg5: memref<1x128xf32, #tpu.memory_space<vmem>>, %arg6: memref<1x128xf32, #tpu.memory_space<vmem>>, %arg7: memref<128x128xf32, #tpu.memory_space<vmem>>, %arg8: memref<1x128xf32, #tpu.memory_space<vmem>>, %arg9: memref<1x128xf32, #tpu.memory_space<vmem>>, %arg10: memref<128x128xf32, #tpu.memory_space<vmem>>, %arg11: memref<1x128xf32, #tpu.memory_space<vmem>>, %arg12: memref<8x128xf32, #tpu.memory_space<vmem>>) attributes {dimension_semantics = [#tpu.dimension_semantics<parallel>], iteration_bounds = array<i64: 1>, scalar_prefetch = 0 : i64, scratch_operands = 0 : i64, tpu.core_type = #tpu.core_type<tc>, window_params = [{transform_indices = @transform_0, window_bounds = array<i64: 8, 2>}, {transform_indices = @transform_1, window_bounds = array<i64: 8, 2>}, {pipeline_mode = #tpu.pipeline_mode<synchronous>, transform_indices = @transform_2, window_bounds = array<i64: 2, 128>}, {pipeline_mode = #tpu.pipeline_mode<synchronous>, transform_indices = @transform_3, window_bounds = array<i64: 2, 128>}, {pipeline_mode = #tpu.pipeline_mode<synchronous>, transform_indices = @transform_4, window_bounds = array<i64: 1, 128>}, {pipeline_mode = #tpu.pipeline_mode<synchronous>, transform_indices = @transform_5, window_bounds = array<i64: 1, 128>}, {pipeline_mode = #tpu.pipeline_mode<synchronous>, transform_indices = @transform_6, window_bounds = array<i64: 128, 128>}, {pipeline_mode = #tpu.pipeline_mode<synchronous>, transform_indices = @transform_7, window_bounds = array<i64: 1, 128>}, {pipeline_mode = #tpu.pipeline_mode<synchronous>, transform_indices = @transform_8, window_bounds = array<i64: 1, 128>}, {pipeline_mode = #tpu.pipeline_mode<synchronous>, transform_indices = @transform_9, window_bounds = array<i64: 128, 128>}, {pipeline_mode = #tpu.pipeline_mode<synchronous>, transform_indices = @transform_10, window_bounds = array<i64: 1, 128>}, {transform_indices = @transform_11, window_bounds = array<i64: 8, 128>}]} {
    %c0 = arith.constant 0 : index
    %c0_0 = arith.constant 0 : index
    %0 = vector.load %arg1[%c0, %c0_0] : memref<8x2xf32, #tpu.memory_space<vmem>>, vector<8x2xf32>
    %c0_1 = arith.constant 0 : index
    %c0_2 = arith.constant 0 : index
    %1 = vector.load %arg3[%c0_1, %c0_2] : memref<2x128xf32, #tpu.memory_space<vmem>>, vector<2x128xf32>
    %cst = arith.constant dense<0.000000e+00> : vector<8x128xf32>
    %2 = tpu.matmul %0, %1, %cst {dimension_numbers = #tpu.dot_dimension_numbers<[1], [0], [0], [1], [0, 0, 1, 1], [], []>} : vector<8x2xf32>, vector<2x128xf32>, vector<8x128xf32> -> vector<8x128xf32>
    %c0_3 = arith.constant 0 : index
    %c0_4 = arith.constant 0 : index
    %3 = vector.load %arg2[%c0_3, %c0_4] : memref<8x2xf32, #tpu.memory_space<vmem>>, vector<8x2xf32>
    %c0_5 = arith.constant 0 : index
    %c0_6 = arith.constant 0 : index
    %4 = vector.load %arg4[%c0_5, %c0_6] : memref<2x128xf32, #tpu.memory_space<vmem>>, vector<2x128xf32>
    %cst_7 = arith.constant dense<0.000000e+00> : vector<8x128xf32>
    %5 = tpu.matmul %3, %4, %cst_7 {dimension_numbers = #tpu.dot_dimension_numbers<[1], [0], [0], [1], [0, 0, 1, 1], [], []>} : vector<8x2xf32>, vector<2x128xf32>, vector<8x128xf32> -> vector<8x128xf32>
    %6 = arith.addf %2, %5 : vector<8x128xf32>
    %c0_8 = arith.constant 0 : index
    %c0_9 = arith.constant 0 : index
    %7 = vector.load %arg5[%c0_8, %c0_9] : memref<1x128xf32, #tpu.memory_space<vmem>>, vector<1x128xf32>
    %8 = vector.broadcast %7 : vector<1x128xf32> to vector<8x128xf32>
    %9 = arith.addf %6, %8 : vector<8x128xf32>
    %c0_10 = arith.constant 0 : index
    %c0_11 = arith.constant 0 : index
    %10 = vector.load %arg6[%c0_10, %c0_11] : memref<1x128xf32, #tpu.memory_space<vmem>>, vector<1x128xf32>
    %11 = vector.broadcast %10 : vector<1x128xf32> to vector<8x128xf32>
    %12 = arith.mulf %11, %9 : vector<8x128xf32>
    %13 = arith.negf %12 : vector<8x128xf32>
    %14 = math.exp %13 : vector<8x128xf32>
    %cst_12 = arith.constant 1.000000e+00 : f32
    %15 = vector.broadcast %cst_12 : f32 to vector<8x128xf32>
    %16 = arith.addf %15, %14 : vector<8x128xf32>
    %17 = arith.divf %15, %16 : vector<8x128xf32>
    %18 = arith.mulf %9, %17 : vector<8x128xf32>
    %c0_13 = arith.constant 0 : index
    %c0_14 = arith.constant 0 : index
    %19 = vector.load %arg7[%c0_13, %c0_14] : memref<128x128xf32, #tpu.memory_space<vmem>>, vector<128x128xf32>
    %cst_15 = arith.constant dense<0.000000e+00> : vector<8x128xf32>
    %20 = tpu.matmul %18, %19, %cst_15 {dimension_numbers = #tpu.dot_dimension_numbers<[1], [0], [0], [1], [0, 0, 1, 1], [], []>} : vector<8x128xf32>, vector<128x128xf32>, vector<8x128xf32> -> vector<8x128xf32>
    %c0_16 = arith.constant 0 : index
    %c0_17 = arith.constant 0 : index
    %21 = vector.load %arg8[%c0_16, %c0_17] : memref<1x128xf32, #tpu.memory_space<vmem>>, vector<1x128xf32>
    %22 = vector.broadcast %21 : vector<1x128xf32> to vector<8x128xf32>
    %23 = arith.addf %20, %22 : vector<8x128xf32>
    %c0_18 = arith.constant 0 : index
    %c0_19 = arith.constant 0 : index
    %24 = vector.load %arg9[%c0_18, %c0_19] : memref<1x128xf32, #tpu.memory_space<vmem>>, vector<1x128xf32>
    %25 = vector.broadcast %24 : vector<1x128xf32> to vector<8x128xf32>
    %26 = arith.mulf %25, %23 : vector<8x128xf32>
    %27 = arith.negf %26 : vector<8x128xf32>
    %28 = math.exp %27 : vector<8x128xf32>
    %cst_20 = arith.constant 1.000000e+00 : f32
    %29 = vector.broadcast %cst_20 : f32 to vector<8x128xf32>
    %30 = arith.addf %29, %28 : vector<8x128xf32>
    %31 = arith.divf %29, %30 : vector<8x128xf32>
    %32 = arith.mulf %23, %31 : vector<8x128xf32>
    %c0_21 = arith.constant 0 : index
    %c0_22 = arith.constant 0 : index
    %33 = vector.load %arg10[%c0_21, %c0_22] : memref<128x128xf32, #tpu.memory_space<vmem>>, vector<128x128xf32>
    %cst_23 = arith.constant dense<0.000000e+00> : vector<8x128xf32>
    %34 = tpu.matmul %32, %33, %cst_23 {dimension_numbers = #tpu.dot_dimension_numbers<[1], [0], [0], [1], [0, 0, 1, 1], [], []>} : vector<8x128xf32>, vector<128x128xf32>, vector<8x128xf32> -> vector<8x128xf32>
    %c0_24 = arith.constant 0 : index
    %c0_25 = arith.constant 0 : index
    %35 = vector.load %arg11[%c0_24, %c0_25] : memref<1x128xf32, #tpu.memory_space<vmem>>, vector<1x128xf32>
    %36 = vector.broadcast %35 : vector<1x128xf32> to vector<8x128xf32>
    %37 = arith.addf %34, %36 : vector<8x128xf32>
    %c0_26 = arith.constant 0 : index
    %c0_27 = arith.constant 0 : index
    %38 = vector.load %arg12[%c0_26, %c0_27] : memref<8x128xf32, #tpu.memory_space<vmem>>, vector<8x128xf32>
    tpu.vector_store %arg12[%c0_26, %c0_27], %37 {strides = array<i32>} : memref<8x128xf32, #tpu.memory_space<vmem>>, vector<8x128xf32>,
    return
  }
  func.func @transform_0(%arg0: i32) -> (i32, i32) {
    %c0_i32 = arith.constant 0 : i32
    %c0_i32_0 = arith.constant 0 : i32
    return %arg0, %c0_i32 : i32, i32
  }
  func.func @transform_1(%arg0: i32) -> (i32, i32) {
    %c0_i32 = arith.constant 0 : i32
    %c0_i32_0 = arith.constant 0 : i32
    return %arg0, %c0_i32 : i32, i32
  }
  func.func @transform_2(%arg0: i32) -> (i32, i32) {
    %c0_i32 = arith.constant 0 : i32
    %c0_i32_0 = arith.constant 0 : i32
    %c0_i32_1 = arith.constant 0 : i32
    return %c0_i32, %c0_i32_0 : i32, i32
  }
  func.func @transform_3(%arg0: i32) -> (i32, i32) {
    %c0_i32 = arith.constant 0 : i32
    %c0_i32_0 = arith.constant 0 : i32
    %c0_i32_1 = arith.constant 0 : i32
    return %c0_i32, %c0_i32_0 : i32, i32
  }
  func.func @transform_4(%arg0: i32) -> (i32, i32) {
    %c0_i32 = arith.constant 0 : i32
    %c0_i32_0 = arith.constant 0 : i32
    %c0_i32_1 = arith.constant 0 : i32
    return %c0_i32, %c0_i32_0 : i32, i32
  }
  func.func @transform_5(%arg0: i32) -> (i32, i32) {
    %c0_i32 = arith.constant 0 : i32
    %c0_i32_0 = arith.constant 0 : i32
    %c0_i32_1 = arith.constant 0 : i32
    return %c0_i32, %c0_i32_0 : i32, i32
  }
  func.func @transform_6(%arg0: i32) -> (i32, i32) {
    %c0_i32 = arith.constant 0 : i32
    %c0_i32_0 = arith.constant 0 : i32
    %c0_i32_1 = arith.constant 0 : i32
    return %c0_i32, %c0_i32_0 : i32, i32
  }
  func.func @transform_7(%arg0: i32) -> (i32, i32) {
    %c0_i32 = arith.constant 0 : i32
    %c0_i32_0 = arith.constant 0 : i32
    %c0_i32_1 = arith.constant 0 : i32
    return %c0_i32, %c0_i32_0 : i32, i32
  }
  func.func @transform_8(%arg0: i32) -> (i32, i32) {
    %c0_i32 = arith.constant 0 : i32
    %c0_i32_0 = arith.constant 0 : i32
    %c0_i32_1 = arith.constant 0 : i32
    return %c0_i32, %c0_i32_0 : i32, i32
  }
  func.func @transform_9(%arg0: i32) -> (i32, i32) {
    %c0_i32 = arith.constant 0 : i32
    %c0_i32_0 = arith.constant 0 : i32
    %c0_i32_1 = arith.constant 0 : i32
    return %c0_i32, %c0_i32_0 : i32, i32
  }
  func.func @transform_10(%arg0: i32) -> (i32, i32) {
    %c0_i32 = arith.constant 0 : i32
    %c0_i32_0 = arith.constant 0 : i32
    %c0_i32_1 = arith.constant 0 : i32
    return %c0_i32, %c0_i32_0 : i32, i32
  }
  func.func @transform_11(%arg0: i32) -> (i32, i32) {
    %c0_i32 = arith.constant 0 : i32
    %c0_i32_0 = arith.constant 0 : i32
    return %arg0, %c0_i32 : i32, i32
  }
}

</mosaic_0001>

<llo_original>
// kernel: tpu_custom_call.1
$region0: #{tpu_custom_call.1}
  #allocation0 [shape = 'u32[]', space=smem, size = 0x4, offset = 0x4, fixed_abs, tag = 'smem constant byte address 0x4 - core index']
  #allocation1 [shape = 'u32[144,128]{1,0:T(1,128)}', space=vmem, size = 0x12000, scoped, tag = 'internal scratch']
  %s0 = inlined_call_operand.vmem [shape: f32[8,2], index: 0, kind: input, shape index: {}]
  %s1 = inlined_call_operand.vmem [shape: f32[8,2], index: 1, kind: input, shape index: {}]
  %s2 = inlined_call_operand.vmem [shape: f32[2,128], index: 2, kind: input, shape index: {}]
  %s3 = inlined_call_operand.vmem [shape: f32[2,128], index: 3, kind: input, shape index: {}]
  %s4 = inlined_call_operand.vmem [shape: f32[1,128], index: 4, kind: input, shape index: {}]
  %s5 = inlined_call_operand.vmem [shape: f32[1,128], index: 5, kind: input, shape index: {}]
  %s6 = inlined_call_operand.hbm [shape: f32[128,128], index: 6, kind: input, shape index: {}]
  %s7 = inlined_call_operand.vmem [shape: f32[1,128], index: 7, kind: input, shape index: {}]
  %s8 = inlined_call_operand.vmem [shape: f32[1,128], index: 8, kind: input, shape index: {}]
  %s9 = inlined_call_operand.hbm [shape: f32[128,128], index: 9, kind: input, shape index: {}]
  %s10 = inlined_call_operand.vmem [shape: f32[1,128], index: 10, kind: input, shape index: {}]
  %s11 = inlined_call_operand.hbm [shape: f32[8,128], index: 11, kind: output, shape index: {}]
  %s12 = sld [smem:[#allocation0]]
  $region62: #{tpu_custom_call.1} parent=0
    _
  %s14 = ssub.s32 1, %s12
  %s15 = scalar_select 0, %s14, %s12
  $region1: #{tpu_custom_call.1} parent=0
    #allocation2 [shape = 'u8[65536]{0}', space=vmem, size = 0x10000, scoped, tag = 'input window, operand 6, single buffered']
    #allocation3 [shape = 's32[1]{0}', space=sflag, size = 0x4, scoped, tag = 'scoped memory for tpu_custom_call.1']
    #allocation4 [shape = 's32[1]{0}', space=sflag, size = 0x4, scoped, tag = 'scoped memory for tpu_custom_call.1']
    #allocation5 [shape = 'u8[65536]{0}', space=vmem, size = 0x10000, scoped, tag = 'input window, operand 9, single buffered']
    #allocation6 [shape = 's32[1]{0}', space=sflag, size = 0x4, scoped, tag = 'scoped memory for tpu_custom_call.1']
    #allocation7 [shape = 'u8[4096]{0}', space=vmem, size = 0x1000, scoped, tag = 'output window, operand 0, single buffered']
    %16 = vsyncpa [#allocation3], 0
    %17 = vsyncpa [#allocation6], 0
    %18 = vsyncpa [#allocation4], 0
    // Predicated region
    $region2: #{tpu_custom_call.1} parent=1 // pred_check
      _
    $region3: #{tpu_custom_call.1} parent=1 // pred_check_branch
      %20 = sbr.rel (0) target = $region5
    $region4: #{tpu_custom_call.1} parent=1 // pred_region
      _
    $region5: #{tpu_custom_call.1} parent=1 // pred_fallthru
      _
    // Predicated region
    $region6: #{tpu_custom_call.1} parent=1 // pred_check
      _
    $region7: #{tpu_custom_call.1} parent=1 // pred_check_branch
      %22 = sbr.rel (0) target = $region9
    $region8: #{tpu_custom_call.1} parent=1 // pred_region
      _
    $region9: #{tpu_custom_call.1} parent=1 // pred_fallthru
      _
    // Predicated region
    $region10: #{tpu_custom_call.1} parent=1 // pred_check
      _
    $region11: #{tpu_custom_call.1} parent=1 // pred_check_branch
      %24 = sbr.rel (0) target = $region13
    $region12: #{tpu_custom_call.1} parent=1 // pred_region
      _
    $region13: #{tpu_custom_call.1} parent=1 // pred_fallthru
      _
    // Predicated region
    $region14: #{tpu_custom_call.1} parent=1 // pred_check
      _
    $region15: #{tpu_custom_call.1} parent=1 // pred_check_branch
      %26 = sbr.rel (0) target = $region17
    $region16: #{tpu_custom_call.1} parent=1 // pred_region
      _
    $region17: #{tpu_custom_call.1} parent=1 // pred_fallthru
      _
    // Predicated region
    $region18: #{tpu_custom_call.1} parent=1 // pred_check
      _
    $region19: #{tpu_custom_call.1} parent=1 // pred_check_branch
      %28 = sbr.rel (0) target = $region21
    $region20: #{tpu_custom_call.1} parent=1 // pred_region
      _
    $region21: #{tpu_custom_call.1} parent=1 // pred_fallthru
      _
    // Predicated region
    $region22: #{tpu_custom_call.1} parent=1 // pred_check
      _
    $region23: #{tpu_custom_call.1} parent=1 // pred_check_branch
      %30 = sbr.rel (0) target = $region25
    $region24: #{tpu_custom_call.1} parent=1 // pred_region
      _
    $region25: #{tpu_custom_call.1} parent=1 // pred_fallthru
      _
    // Predicated region
    $region26: #{tpu_custom_call.1} parent=1 // pred_check
      _
    $region27: #{tpu_custom_call.1} parent=1 // pred_check_branch
      %32 = sbr.rel (0) target = $region29
    $region28: #{tpu_custom_call.1} parent=1 // pred_region
      %s34 = ssub.s32 2048, 2048
      %35 = vsyncadd [#allocation3], %s34
      %s36 = sshll.u32 [#allocation2], 4
      %s37 = int_to_ptr.vmem [resolvable:$true] %s36
      %42 = dma.hbm_to_vmem [thread:$0]  %s6, 2048, %s37, [#allocation3], 128, 128, 8
    $region29: #{tpu_custom_call.1} parent=1 // pred_fallthru
      _
    // Predicated region
    $region30: #{tpu_custom_call.1} parent=1 // pred_check
      _
    $region31: #{tpu_custom_call.1} parent=1 // pred_check_branch
      %44 = sbr.rel (0) target = $region33
    $region32: #{tpu_custom_call.1} parent=1 // pred_region
      _
    $region33: #{tpu_custom_call.1} parent=1 // pred_fallthru
      _
    // Predicated region
    $region34: #{tpu_custom_call.1} parent=1 // pred_check
      _
    $region35: #{tpu_custom_call.1} parent=1 // pred_check_branch
      %46 = sbr.rel (0) target = $region37
    $region36: #{tpu_custom_call.1} parent=1 // pred_region
      _
    $region37: #{tpu_custom_call.1} parent=1 // pred_fallthru
      _
    // Predicated region
    $region38: #{tpu_custom_call.1} parent=1 // pred_check
      _
    $region39: #{tpu_custom_call.1} parent=1 // pred_check_branch
      %48 = sbr.rel (0) target = $region41
    $region40: #{tpu_custom_call.1} parent=1 // pred_region
      %s50 = ssub.s32 2048, 2048
      %51 = vsyncadd [#allocation6], %s50
      %s52 = sshll.u32 [#allocation5], 4
      %s53 = int_to_ptr.vmem [resolvable:$true] %s52
      %58 = dma.hbm_to_vmem [thread:$0]  %s9, 2048, %s53, [#allocation6], 128, 128, 8
    $region41: #{tpu_custom_call.1} parent=1 // pred_fallthru
      _
    // Predicated region
    $region42: #{tpu_custom_call.1} parent=1 // pred_check
      _
    $region43: #{tpu_custom_call.1} parent=1 // pred_check_branch
      %60 = sbr.rel (0) target = $region45
    $region44: #{tpu_custom_call.1} parent=1 // pred_region
      _
    $region45: #{tpu_custom_call.1} parent=1 // pred_fallthru
      _
    // Predicated region
    $region46: #{tpu_custom_call.1} parent=1 // pred_check
      _
    $region47: #{tpu_custom_call.1} parent=1 // pred_check_branch
      %62 = sbr.rel (0) target = $region49
    $region48: #{tpu_custom_call.1} parent=1 // pred_region
      %63 = dma.done [#allocation3], 2048
    $region49: #{tpu_custom_call.1} parent=1 // pred_fallthru
      _
    // Predicated region
    $region50: #{tpu_custom_call.1} parent=1 // pred_check
      _
    $region51: #{tpu_custom_call.1} parent=1 // pred_check_branch
      %65 = sbr.rel (0) target = $region53
    $region52: #{tpu_custom_call.1} parent=1 // pred_region
      %66 = dma.done [#allocation6], 2048
    $region53: #{tpu_custom_call.1} parent=1 // pred_fallthru
      _
    %v67 = vld [vmem:[%s0] sm:$0xff]
    %v68 = vld [vmem:[%s2] sm:$0x3]
    %v69 = vld [vmem:[%s1] sm:$0xff]
    %v70 = vld [vmem:[%s3] sm:$0x3]
    %vm71 = vcmask 15360
    %v73 = vsel %vm71, %v69, 0
    %vm75 = vcmask 1041408
    %v77 = vsel %vm75, %v70, 0
    %79 = vmatprep.subr.mxu0 0.0
    %80 = vmatpush1.msra.mxu0 %v77
    %81 = vmatprep.subr.mxu0 0.0
    %82 = vmatpush1.msra.mxu0 0.0
    %83 = vmatprep.subr.mxu0 0.0
    %84 = vmatpush1.msra.mxu0 0.0
    %85 = vmatprep.subr.mxu0 0.0
    %86 = vmatpush1.msra.mxu0 0.0
    %87 = vmatprep.subr.mxu0 0.0
    %88 = vmatpush1.msra.mxu0 0.0
    %89 = vmatprep.subr.mxu0 0.0
    %90 = vmatpush1.msra.mxu0 0.0
    %91 = vmatprep.subr.mxu0 0.0
    %92 = vmatpush1.msra.mxu0 0.0
    %93 = vmatprep.subr.mxu0 0.0
    %94 = vmatpush1.msra.mxu0 0.0
    %95 = vmatprep.subr.mxu0 0.0
    %96 = vmatpush1.msra.mxu0 0.0
    %97 = vmatprep.subr.mxu0 0.0
    %98 = vmatpush1.msra.mxu0 0.0
    %99 = vmatprep.subr.mxu0 0.0
    %100 = vmatpush1.msra.mxu0 0.0
    %101 = vmatprep.subr.mxu0 0.0
    %102 = vmatpush1.msra.mxu0 0.0
    %103 = vmatprep.subr.mxu0 0.0
    %104 = vmatpush1.msra.mxu0 0.0
    %105 = vmatprep.subr.mxu0 0.0
    %106 = vmatpush1.msra.mxu0 0.0
    %107 = vmatprep.subr.mxu0 0.0
    %108 = vmatpush1.msra.mxu0 0.0
    %109 = vmatprep.subr.mxu0 0.0
    %110 = vmatpush1.msra.mxu0 0.0
    %111 = vmatprep.subr.mxu0 0.0
    %112 = vmatpush1.msra.mxu0 0.0
    %113 = vmatprep.subr.mxu0 0.0
    %114 = vmatpush1.msra.mxu0 0.0
    %115 = vmatprep.subr.mxu0 0.0
    %116 = vmatpush1.msra.mxu0 0.0
    %117 = vmatprep.subr.mxu0 0.0
    %118 = vmatpush1.msra.mxu0 0.0
    %119 = vmatprep.subr.mxu0 0.0
    %120 = vmatpush1.msra.mxu0 0.0
    %121 = vmatprep.subr.mxu0 0.0
    %122 = vmatpush1.msra.mxu0 0.0
    %123 = vmatprep.subr.mxu0 0.0
    %124 = vmatpush1.msra.mxu0 0.0
    %125 = vmatprep.subr.mxu0 0.0
    %126 = vmatpush1.msra.mxu0 0.0
    %127 = vmatprep.subr.mxu0 0.0
    %128 = vmatpush1.msra.mxu0 0.0
    %129 = vmatprep.subr.mxu0 0.0
    %130 = vmatpush1.msra.mxu0 0.0
    %131 = vmatprep.subr.mxu0 0.0
    %132 = vmatpush1.msra.mxu0 0.0
    %133 = vmatprep.subr.mxu0 0.0
    %134 = vmatpush1.msra.mxu0 0.0
    %135 = vmatprep.subr.mxu0 0.0
    %136 = vmatpush1.msra.mxu0 0.0
    %137 = vmatprep.subr.mxu0 0.0
    %138 = vmatpush1.msra.mxu0 0.0
    %139 = vmatprep.subr.mxu0 0.0
    %140 = vmatpush1.msra.mxu0 0.0
    %141 = vmatprep.subr.mxu0 0.0
    %142 = vmatpush1.msra.mxu0 0.0
    %143 = vmatprep.mubr.f32.mxu0 0.0
    %144 = vmatmul.mubr.f32.gmra.mrb[0].mxu0 %v73
    %v145 = vpop.f32.mrb[0].mxu0
    %v146 = vadd.f32 0.0, %v145
    %v147 = vpop.f32.mrb[0].mxu0
    %148 = vdwg.mxu0
    %v150 = vsel %vm71, %v67, 0
    %v153 = vsel %vm75, %v68, 0
    %155 = vmatprep.subr.mxu0 0.0
    %156 = vmatpush1.msra.mxu0 %v153
    %157 = vmatprep.subr.mxu0 0.0
    %158 = vmatpush1.msra.mxu0 0.0
    %159 = vmatprep.subr.mxu0 0.0
    %160 = vmatpush1.msra.mxu0 0.0
    %161 = vmatprep.subr.mxu0 0.0
    %162 = vmatpush1.msra.mxu0 0.0
    %163 = vmatprep.subr.mxu0 0.0
    %164 = vmatpush1.msra.mxu0 0.0
    %165 = vmatprep.subr.mxu0 0.0
    %166 = vmatpush1.msra.mxu0 0.0
    %167 = vmatprep.subr.mxu0 0.0
    %168 = vmatpush1.msra.mxu0 0.0
    %169 = vmatprep.subr.mxu0 0.0
    %170 = vmatpush1.msra.mxu0 0.0
    %171 = vmatprep.subr.mxu0 0.0
    %172 = vmatpush1.msra.mxu0 0.0
    %173 = vmatprep.subr.mxu0 0.0
    %174 = vmatpush1.msra.mxu0 0.0
    %175 = vmatprep.subr.mxu0 0.0
    %176 = vmatpush1.msra.mxu0 0.0
    %177 = vmatprep.subr.mxu0 0.0
    %178 = vmatpush1.msra.mxu0 0.0
    %179 = vmatprep.subr.mxu0 0.0
    %180 = vmatpush1.msra.mxu0 0.0
    %181 = vmatprep.subr.mxu0 0.0
    %182 = vmatpush1.msra.mxu0 0.0
    %183 = vmatprep.subr.mxu0 0.0
    %184 = vmatpush1.msra.mxu0 0.0
    %185 = vmatprep.subr.mxu0 0.0
    %186 = vmatpush1.msra.mxu0 0.0
    %187 = vmatprep.subr.mxu0 0.0
    %188 = vmatpush1.msra.mxu0 0.0
    %189 = vmatprep.subr.mxu0 0.0
    %190 = vmatpush1.msra.mxu0 0.0
    %191 = vmatprep.subr.mxu0 0.0
    %192 = vmatpush1.msra.mxu0 0.0
    %193 = vmatprep.subr.mxu0 0.0
    %194 = vmatpush1.msra.mxu0 0.0
    %195 = vmatprep.subr.mxu0 0.0
    %196 = vmatpush1.msra.mxu0 0.0
    %197 = vmatprep.subr.mxu0 0.0
    %198 = vmatpush1.msra.mxu0 0.0
    %199 = vmatprep.subr.mxu0 0.0
    %200 = vmatpush1.msra.mxu0 0.0
    %201 = vmatprep.subr.mxu0 0.0
    %202 = vmatpush1.msra.mxu0 0.0
    %203 = vmatprep.subr.mxu0 0.0
    %204 = vmatpush1.msra.mxu0 0.0
    %205 = vmatprep.subr.mxu0 0.0
    %206 = vmatpush1.msra.mxu0 0.0
    %207 = vmatprep.subr.mxu0 0.0
    %208 = vmatpush1.msra.mxu0 0.0
    %209 = vmatprep.subr.mxu0 0.0
    %210 = vmatpush1.msra.mxu0 0.0
    %211 = vmatprep.subr.mxu0 0.0
    %212 = vmatpush1.msra.mxu0 0.0
    %213 = vmatprep.subr.mxu0 0.0
    %214 = vmatpush1.msra.mxu0 0.0
    %215 = vmatprep.subr.mxu0 0.0
    %216 = vmatpush1.msra.mxu0 0.0
    %217 = vmatprep.subr.mxu0 0.0
    %218 = vmatpush1.msra.mxu0 0.0
    %219 = vmatprep.mubr.f32.mxu0 0.0
    %220 = vmatmul.mubr.f32.gmra.mrb[0].mxu0 %v150
    %v221 = vpop.f32.mrb[0].mxu0
    %v222 = vadd.f32 %v146, %v221
    %v223 = vpop.f32.mrb[0].mxu0
    %224 = vdwg.mxu0
    %v225 = vld [vmem:[%s4] sm:$0x1]
    %v227 = vlaneseq
    %v228 = vshrl.u32 %v227, 7
    %v229 = vsub.s32 0, %v228
    %v230 = vrot.slane %v225, %v229
    %v232 = vadd.f32 %v222, %v230
    %v233 = vld [vmem:[%s5] sm:$0x1]
    %v235 = vlaneseq
    %v236 = vshrl.u32 %v235, 7
    %v237 = vsub.s32 0, %v236
    %v238 = vrot.slane %v233, %v237
    %v240 = vmul.f32 %v238, %v232
    %v241 = vxor.u32 %v240, 2147483648
    %v242 = vmul.f32 %v241, 1.442695
    %v243 = vpow.pop %v242
    %v244 = vadd.f32 %v243, 1.0
    %v245 = vrcp.pop %v244
    %v246 = vmul.f32 1.0, %v245
    %v247 = vmul.f32 %v232, %v246
    %v248 = vld [vmem:[#allocation2] sm:$0xff]
    %v249 = vld [vmem:[#allocation2 + $0x8] sm:$0xff]
    %v250 = vld [vmem:[#allocation2 + $0x10] sm:$0xff]
    %v251 = vld [vmem:[#allocation2 + $0x18] sm:$0xff]
    %v252 = vld [vmem:[#allocation2 + $0x20] sm:$0xff]
    %v253 = vld [vmem:[#allocation2 + $0x28] sm:$0xff]
    %v254 = vld [vmem:[#allocation2 + $0x30] sm:$0xff]
    %v255 = vld [vmem:[#allocation2 + $0x38] sm:$0xff]
    %v256 = vld [vmem:[#allocation2 + $0x40] sm:$0xff]
    %v257 = vld [vmem:[#allocation2 + $0x48] sm:$0xff]
    %v258 = vld [vmem:[#allocation2 + $0x50] sm:$0xff]
    %v259 = vld [vmem:[#allocation2 + $0x58] sm:$0xff]
    %v260 = vld [vmem:[#allocation2 + $0x60] sm:$0xff]
    %v261 = vld [vmem:[#allocation2 + $0x68] sm:$0xff]
    %v262 = vld [vmem:[#allocation2 + $0x70] sm:$0xff]
    %v263 = vld [vmem:[#allocation2 + $0x78] sm:$0xff]
    %v264 = vld [vmem:[%s7] sm:$0x1]
    %v266 = vlaneseq
    %v267 = vshrl.u32 %v266, 7
    %v268 = vsub.s32 0, %v267
    %v269 = vrot.slane %v264, %v268
    %271 = vmatprep.subr.mxu0 0.0
    %272 = vmatpush1.msra.mxu0 %v248
    %273 = vmatprep.subr.mxu0 0.0
    %274 = vmatpush1.msra.mxu0 %v249
    %275 = vmatprep.subr.mxu0 0.0
    %276 = vmatpush1.msra.mxu0 %v250
    %277 = vmatprep.subr.mxu0 0.0
    %278 = vmatpush1.msra.mxu0 %v251
    %279 = vmatprep.subr.mxu0 0.0
    %280 = vmatpush1.msra.mxu0 %v252
    %281 = vmatprep.subr.mxu0 0.0
    %282 = vmatpush1.msra.mxu0 %v253
    %283 = vmatprep.subr.mxu0 0.0
    %284 = vmatpush1.msra.mxu0 %v254
    %285 = vmatprep.subr.mxu0 0.0
    %286 = vmatpush1.msra.mxu0 %v255
    %287 = vmatprep.subr.mxu0 0.0
    %288 = vmatpush1.msra.mxu0 %v256
    %289 = vmatprep.subr.mxu0 0.0
    %290 = vmatpush1.msra.mxu0 %v257
    %291 = vmatprep.subr.mxu0 0.0
    %292 = vmatpush1.msra.mxu0 %v258
    %293 = vmatprep.subr.mxu0 0.0
    %294 = vmatpush1.msra.mxu0 %v259
    %295 = vmatprep.subr.mxu0 0.0
    %296 = vmatpush1.msra.mxu0 %v260
    %297 = vmatprep.subr.mxu0 0.0
    %298 = vmatpush1.msra.mxu0 %v261
    %299 = vmatprep.subr.mxu0 0.0
    %300 = vmatpush1.msra.mxu0 %v262
    %301 = vmatprep.subr.mxu0 0.0
    %302 = vmatpush1.msra.mxu0 %v263
    %303 = vmatprep.subr.mxu0 0.0
    %304 = vmatpush1.msra.mxu0 0.0
    %305 = vmatprep.subr.mxu0 0.0
    %306 = vmatpush1.msra.mxu0 0.0
    %307 = vmatprep.subr.mxu0 0.0
    %308 = vmatpush1.msra.mxu0 0.0
    %309 = vmatprep.subr.mxu0 0.0
    %310 = vmatpush1.msra.mxu0 0.0
    %311 = vmatprep.subr.mxu0 0.0
    %312 = vmatpush1.msra.mxu0 0.0
    %313 = vmatprep.subr.mxu0 0.0
    %314 = vmatpush1.msra.mxu0 0.0
    %315 = vmatprep.subr.mxu0 0.0
    %316 = vmatpush1.msra.mxu0 0.0
    %317 = vmatprep.subr.mxu0 0.0
    %318 = vmatpush1.msra.mxu0 0.0
    %319 = vmatprep.subr.mxu0 0.0
    %320 = vmatpush1.msra.mxu0 0.0
    %321 = vmatprep.subr.mxu0 0.0
    %322 = vmatpush1.msra.mxu0 0.0
    %323 = vmatprep.subr.mxu0 0.0
    %324 = vmatpush1.msra.mxu0 0.0
    %325 = vmatprep.subr.mxu0 0.0
    %326 = vmatpush1.msra.mxu0 0.0
    %327 = vmatprep.subr.mxu0 0.0
    %328 = vmatpush1.msra.mxu0 0.0
    %329 = vmatprep.subr.mxu0 0.0
    %330 = vmatpush1.msra.mxu0 0.0
    %331 = vmatprep.subr.mxu0 0.0
    %332 = vmatpush1.msra.mxu0 0.0
    %333 = vmatprep.subr.mxu0 0.0
    %334 = vmatpush1.msra.mxu0 0.0
    %335 = vmatprep.mubr.f32.mxu0 0.0
    %336 = vmatmul.mubr.f32.gmra.mrb[0].mxu0 %v247
    %v337 = vpop.f32.mrb[0].mxu0
    %v338 = vadd.f32 %v269, %v337
    %v339 = vpop.f32.mrb[0].mxu0
    %340 = vdwg.mxu0
    %v341 = vld [vmem:[%s8] sm:$0x1]
    %v343 = vlaneseq
    %v344 = vshrl.u32 %v343, 7
    %v345 = vsub.s32 0, %v344
    %v346 = vrot.slane %v341, %v345
    %v348 = vmul.f32 %v346, %v338
    %v349 = vxor.u32 %v348, 2147483648
    %v350 = vmul.f32 %v349, 1.442695
    %v351 = vpow.pop %v350
    %v352 = vadd.f32 %v351, 1.0
    %v353 = vrcp.pop %v352
    %v354 = vmul.f32 1.0, %v353
    %v355 = vmul.f32 %v338, %v354
    %v356 = vld [vmem:[#allocation5] sm:$0xff]
    %v357 = vld [vmem:[#allocation5 + $0x8] sm:$0xff]
    %v358 = vld [vmem:[#allocation5 + $0x10] sm:$0xff]
    %v359 = vld [vmem:[#allocation5 + $0x18] sm:$0xff]
    %v360 = vld [vmem:[#allocation5 + $0x20] sm:$0xff]
    %v361 = vld [vmem:[#allocation5 + $0x28] sm:$0xff]
    %v362 = vld [vmem:[#allocation5 + $0x30] sm:$0xff]
    %v363 = vld [vmem:[#allocation5 + $0x38] sm:$0xff]
    %v364 = vld [vmem:[#allocation5 + $0x40] sm:$0xff]
    %v365 = vld [vmem:[#allocation5 + $0x48] sm:$0xff]
    %v366 = vld [vmem:[#allocation5 + $0x50] sm:$0xff]
    %v367 = vld [vmem:[#allocation5 + $0x58] sm:$0xff]
    %v368 = vld [vmem:[#allocation5 + $0x60] sm:$0xff]
    %v369 = vld [vmem:[#allocation5 + $0x68] sm:$0xff]
    %v370 = vld [vmem:[#allocation5 + $0x70] sm:$0xff]
    %v371 = vld [vmem:[#allocation5 + $0x78] sm:$0xff]
    %v372 = vld [vmem:[%s10] sm:$0x1]
    %v374 = vlaneseq
    %v375 = vshrl.u32 %v374, 7
    %v376 = vsub.s32 0, %v375
    %v377 = vrot.slane %v372, %v376
    %379 = vmatprep.subr.mxu0 0.0
    %380 = vmatpush1.msra.mxu0 %v356
    %381 = vmatprep.subr.mxu0 0.0
    %382 = vmatpush1.msra.mxu0 %v357
    %383 = vmatprep.subr.mxu0 0.0
    %384 = vmatpush1.msra.mxu0 %v358
    %385 = vmatprep.subr.mxu0 0.0
    %386 = vmatpush1.msra.mxu0 %v359
    %387 = vmatprep.subr.mxu0 0.0
    %388 = vmatpush1.msra.mxu0 %v360
    %389 = vmatprep.subr.mxu0 0.0
    %390 = vmatpush1.msra.mxu0 %v361
    %391 = vmatprep.subr.mxu0 0.0
    %392 = vmatpush1.msra.mxu0 %v362
    %393 = vmatprep.subr.mxu0 0.0
    %394 = vmatpush1.msra.mxu0 %v363
    %395 = vmatprep.subr.mxu0 0.0
    %396 = vmatpush1.msra.mxu0 %v364
    %397 = vmatprep.subr.mxu0 0.0
    %398 = vmatpush1.msra.mxu0 %v365
    %399 = vmatprep.subr.mxu0 0.0
    %400 = vmatpush1.msra.mxu0 %v366
    %401 = vmatprep.subr.mxu0 0.0
    %402 = vmatpush1.msra.mxu0 %v367
    %403 = vmatprep.subr.mxu0 0.0
    %404 = vmatpush1.msra.mxu0 %v368
    %405 = vmatprep.subr.mxu0 0.0
    %406 = vmatpush1.msra.mxu0 %v369
    %407 = vmatprep.subr.mxu0 0.0
    %408 = vmatpush1.msra.mxu0 %v370
    %409 = vmatprep.subr.mxu0 0.0
    %410 = vmatpush1.msra.mxu0 %v371
    %411 = vmatprep.subr.mxu0 0.0
    %412 = vmatpush1.msra.mxu0 0.0
    %413 = vmatprep.subr.mxu0 0.0
    %414 = vmatpush1.msra.mxu0 0.0
    %415 = vmatprep.subr.mxu0 0.0
    %416 = vmatpush1.msra.mxu0 0.0
    %417 = vmatprep.subr.mxu0 0.0
    %418 = vmatpush1.msra.mxu0 0.0
    %419 = vmatprep.subr.mxu0 0.0
    %420 = vmatpush1.msra.mxu0 0.0
    %421 = vmatprep.subr.mxu0 0.0
    %422 = vmatpush1.msra.mxu0 0.0
    %423 = vmatprep.subr.mxu0 0.0
    %424 = vmatpush1.msra.mxu0 0.0
    %425 = vmatprep.subr.mxu0 0.0
    %426 = vmatpush1.msra.mxu0 0.0
    %427 = vmatprep.subr.mxu0 0.0
    %428 = vmatpush1.msra.mxu0 0.0
    %429 = vmatprep.subr.mxu0 0.0
    %430 = vmatpush1.msra.mxu0 0.0
    %431 = vmatprep.subr.mxu0 0.0
    %432 = vmatpush1.msra.mxu0 0.0
    %433 = vmatprep.subr.mxu0 0.0
    %434 = vmatpush1.msra.mxu0 0.0
    %435 = vmatprep.subr.mxu0 0.0
    %436 = vmatpush1.msra.mxu0 0.0
    %437 = vmatprep.subr.mxu0 0.0
    %438 = vmatpush1.msra.mxu0 0.0
    %439 = vmatprep.subr.mxu0 0.0
    %440 = vmatpush1.msra.mxu0 0.0
    %441 = vmatprep.subr.mxu0 0.0
    %442 = vmatpush1.msra.mxu0 0.0
    %443 = vmatprep.mubr.f32.mxu0 0.0
    %444 = vmatmul.mubr.f32.gmra.mrb[0].mxu0 %v355
    %v445 = vpop.f32.mrb[0].mxu0
    %v446 = vadd.f32 %v377, %v445
    %v447 = vpop.f32.mrb[0].mxu0
    %448 = vdwg.mxu0
    %449 = vst [vmem:[#allocation7] sm:$0xff] %v446
    // Predicated region
    $region54: #{tpu_custom_call.1} parent=1 // pred_check
      _
    $region55: #{tpu_custom_call.1} parent=1 // pred_check_branch
      %451 = sbr.rel (0) target = $region57
    $region56: #{tpu_custom_call.1} parent=1 // pred_region
      %s453 = ssub.s32 128, 128
      %454 = vsyncadd [#allocation4], %s453
      %s456 = sshll.u32 [#allocation7], 4
      %s457 = int_to_ptr.vmem [resolvable:$true] %s456
      %459 = dma.vmem_to_hbm [thread:$0]  %s457, 128, %s11, [#allocation4]
    $region57: #{tpu_custom_call.1} parent=1 // pred_fallthru
      _
    // Predicated region
    $region58: #{tpu_custom_call.1} parent=1 // pred_check
      _
    $region59: #{tpu_custom_call.1} parent=1 // pred_check_branch
      %461 = sbr.rel (0) target = $region61
    $region60: #{tpu_custom_call.1} parent=1 // pred_region
      %462 = dma.done [#allocation4], 128
    $region61: #{tpu_custom_call.1} parent=1 // pred_fallthru
      _
    %463 = vsyncpa [#allocation3], 1
    %464 = vsyncpa [#allocation6], 1
    %465 = vsyncpa [#allocation4], 1

</llo_original>
